<compile_context>
chip_gen: v5e
topology: v5e:2x2
jax: 0.10.0
libtpu: 0.0.40
codegen_flags: <defaults>
</compile_context>

<pallas_src>
import jax
import jax.numpy as jnp
from jax import lax
from jax.experimental import pallas as pl
from jax.experimental.pallas import tpu as pltpu


# ---------------------------------------------------------------------------
# In-kernel helpers (trace into the Pallas body) -- all f32 elementwise.
# ---------------------------------------------------------------------------
def _ln(x):
    m = jnp.mean(x, axis=-1, keepdims=True)
    v = jnp.mean((x - m) ** 2, axis=-1, keepdims=True)
    return (x - m) * lax.rsqrt(v + 1e-5)


def _softmax(s):
    m = jnp.max(s, axis=-1, keepdims=True)
    e = jnp.exp(s - m)
    inv = pl.reciprocal(jnp.sum(e, axis=-1, keepdims=True), approx=True)
    return e * inv


def _bdot(a, w):
    """(M, D) f32 activations x (D, K) bf16 weights -> (M, K) f32 (MXU, f32 acc)."""
    return jnp.dot(a.astype(jnp.bfloat16), w, preferred_element_type=jnp.float32)


# ---------------------------------------------------------------------------
# Pallas kernel: one batch-block per grid step.
#   x    : (Bt, N, D)  extracted SOC-slot hidden states (zero padded rows)
#   y    : (Bt, T, D)  image memory
#   bias : (Bt, 1, N)  additive key mask (0 for valid slot, -1e9 for padding)
# ---------------------------------------------------------------------------
def _md_kernel(x_ref, y_ref, bias_ref,
               wqkv_s_ref, wos_ref, wqc_ref, wkv_c_ref, woc_ref,
               w1_ref, w2_ref, o_ref):
    x = x_ref[...]                       # (Bt, N, D) f32
    y = y_ref[...]                       # (Bt, T, D) f32
    bias = bias_ref[...]                 # (Bt, 1, N) f32 (stays f32: -1e9 safe)
    Bt, N, D = x.shape
    T = y.shape[1]
    scale = 1.0 / (D ** 0.5)

    # --- masked self-attention over the extracted SOC slots -----------------
    xn2 = _ln(x).reshape(Bt * N, D)
    qkv = _bdot(xn2, wqkv_s_ref[...])    # fused (D, 3D) projection
    q = qkv[:, 0 * D:1 * D].reshape(Bt, N, D)
    k = qkv[:, 1 * D:2 * D].reshape(Bt, N, D)
    v = qkv[:, 2 * D:3 * D].reshape(Bt, N, D)
    s = jnp.einsum('bqd,bkd->bqk', q.astype(jnp.bfloat16), k.astype(jnp.bfloat16),
                   preferred_element_type=jnp.float32) * scale
    s = s + bias                         # broadcast key mask over query rows
    p = _softmax(s)
    a = jnp.einsum('bqk,bkd->bqd', p.astype(jnp.bfloat16), v.astype(jnp.bfloat16),
                   preferred_element_type=jnp.float32)
    h1 = x + _bdot(a.reshape(Bt * N, D), wos_ref[...]).reshape(Bt, N, D)

    # --- cross-attention: SOC slots attend to image memory ------------------
    hn2 = _ln(h1).reshape(Bt * N, D)
    q = _bdot(hn2, wqc_ref[...]).reshape(Bt, N, D)
    kv = _bdot(y.reshape(Bt * T, D), wkv_c_ref[...])     # fused (D, 2D) projection
    k = kv[:, 0 * D:1 * D].reshape(Bt, T, D)
    v = kv[:, 1 * D:2 * D].reshape(Bt, T, D)
    s = jnp.einsum('bqd,bkd->bqk', q.astype(jnp.bfloat16), k.astype(jnp.bfloat16),
                   preferred_element_type=jnp.float32) * scale
    p = _softmax(s)
    a = jnp.einsum('bqk,bkd->bqd', p.astype(jnp.bfloat16), v.astype(jnp.bfloat16),
                   preferred_element_type=jnp.float32)
    h2 = h1 + _bdot(a.reshape(Bt * N, D), woc_ref[...]).reshape(Bt, N, D)

    # --- feed-forward --------------------------------------------------------
    hn2 = _ln(h2).reshape(Bt * N, D)
    f = jnp.maximum(_bdot(hn2, w1_ref[...]), 0.0)
    f = _bdot(f, w2_ref[...]).reshape(Bt, N, D)

    o_ref[...] = (h2 + f).astype(o_ref.dtype)


def md_blocks(x, y, bias, params, block_b=None):
    """Apply the decoder block kernel, blocking over the batch axis."""
    B, N, D = x.shape
    T = y.shape[1]

    # Fuse + cast weights to bf16 once in the wrapper (halves weight VMEM;
    # MXU is bf16-native with f32 accumulation on v5e/v6e/v7x).
    wqkv_s = jnp.concatenate(
        [params["wqs"], params["wks"], params["wvs"]], axis=1).astype(jnp.bfloat16)
    wkv_c = jnp.concatenate(
        [params["wkc"], params["wvc"]], axis=1).astype(jnp.bfloat16)
    weights = [
        wqkv_s,
        params["wos"].astype(jnp.bfloat16),
        params["wqc"].astype(jnp.bfloat16),
        wkv_c,
        params["woc"].astype(jnp.bfloat16),
        params["w1"].astype(jnp.bfloat16),
        params["w2"].astype(jnp.bfloat16),
    ]

    # Batch block size: aim for >=256 matmul rows per step (B*N folded into M);
    # clamp to B so small batches run in a single grid step.
    if block_b is None:
        block_b = min(B, max(1, 256 // max(N, 1)))
    grid_b = pl.cdiv(B, block_b)
    Bp = grid_b * block_b
    if Bp != B:
        pad = Bp - B
        x = jnp.pad(x, ((0, pad), (0, 0), (0, 0)))
        y = jnp.pad(y, ((0, pad), (0, 0), (0, 0)))
        bias = jnp.pad(bias, ((0, pad), (0, 0), (0, 0)), constant_values=-1e9)

    # Weights use a constant index_map across the (small) grid, so they are
    # fetched once; at production sizes consider single-buffering them.
    w_specs = [pl.BlockSpec(w.shape, lambda b: (0, 0)) for w in weights]
    in_specs = [
        pl.BlockSpec((block_b, N, D), lambda b: (b, 0, 0)),   # x
        pl.BlockSpec((block_b, T, D), lambda b: (b, 0, 0)),   # y
        pl.BlockSpec((block_b, 1, N), lambda b: (b, 0, 0)),   # bias
    ] + w_specs

    out = pl.pallas_call(
        _md_kernel,
        out_shape=jax.ShapeDtypeStruct((Bp, N, D), jnp.float32),
        grid=(grid_b,),
        in_specs=in_specs,
        out_specs=pl.BlockSpec((block_b, N, D), lambda b: (b, 0, 0)),
        compiler_params=pltpu.CompilerParams(
            dimension_semantics=("parallel",)),   # v7x: split batch blocks over TCs
    )(x, y, bias, *weights)
    return out[:B]


# ---------------------------------------------------------------------------
# Fetcher.forward
# ---------------------------------------------------------------------------
def fetcher_forward(img, hid, seq, params, SOC, EOS):
    assert hid.ndim == 3 and seq.ndim == 2
    B, S, D = hid.shape

    # soc = isin(seq, SOC) & not(cumsum(isin(seq, EOS)))  -> SOC tokens before 1st EOS
    soc = (seq == SOC)
    eos = (seq == EOS)
    soc = jnp.logical_and(soc, jnp.cumsum(eos.astype(jnp.int32), axis=1) == 0)

    counts = jnp.sum(soc.astype(jnp.int32), axis=1)

    # Static upper bound on extracted SOC rows (no host sync, single compile).
    # Padding rows are zeroed and fully masked out of the attention via `bias`.
    N = S

    # extract(hid, mask=soc): pack True rows to the front, zero-pad to N rows.
    order = jnp.argsort(jnp.logical_not(soc), axis=1, stable=True)
    idx = order[:, :N]                                        # (B, N)
    valid = jnp.arange(N)[None, :] < counts[:, None]          # (B, N) == run.squeeze(2)
    ext = jnp.take_along_axis(hid, idx[:, :, None], axis=1)   # (B, N, D)
    ext = jnp.where(valid[:, :, None], ext, 0.0)

    # mask = run.unsqueeze(1).mT  -> key mask over the N slots, as additive bias
    bias = jnp.where(valid, 0.0, -1e9).astype(jnp.float32)[:, None, :]  # (B,1,N)

    # ext = self.md(x=ext, y=img, mask=...)
    ext_out = md_blocks(ext.astype(jnp.float32), img.astype(jnp.float32), bias, params)

    # hid = hid.masked_scatter(soc, ext.masked_select(run)):
    # write ext_out row j of batch b back to the j-th SOC position of batch b.
    rank = jnp.cumsum(soc.astype(jnp.int32), axis=1) - 1      # rank of each SOC position
    rank = jnp.clip(rank, 0, N - 1)
    gathered = jnp.take_along_axis(ext_out, rank[:, :, None], axis=1)   # (B, S, D)
    hid_out = jnp.where(soc[:, :, None], gathered, hid)

    return hid_out, ext_out


# ---------------------------------------------------------------------------
# Deterministic parameter init (Blocks stand-in: one decoder block)
# ---------------------------------------------------------------------------
def init_params(key, D, H):
    names = ["wqs", "wks", "wvs", "wos", "wqc", "wkc", "wvc", "woc"]
    keys = jax.random.split(key, len(names) + 2)
    params = {
        n: (jax.random.normal(k, (D, D), jnp.float32) * (D ** -0.5))
        for n, k in zip(names, keys[:len(names)])
    }
    params["w1"] = jax.random.normal(keys[-2], (D, H), jnp.float32) * (D ** -0.5)
    params["w2"] = jax.random.normal(keys[-1], (H, D), jnp.float32) * (H ** -0.5)
    return params


if __name__ == "__main__":
    B, S, D, T = 2, 8, 32, 16          # batch, seq len, hidden, image tokens (4x4)
    SOC, EOS = 1, 2

    key = jax.random.PRNGKey(0)
    k_hid, k_img, k_par = jax.random.split(key, 3)
    hid = jax.random.normal(k_hid, (B, S, D), jnp.float32)
    img = jax.random.normal(k_img, (B, T, D), jnp.float32)
    # batch 0: SOC at positions 0,2 before EOS at 3 (SOC at 4 is after EOS -> ignored)
    # batch 1: SOC at positions 1,3,4 before EOS at 5
    seq = jnp.array([[1, 5, 1, 2, 1, 6, 7, 2],
                     [3, 1, 4, 1, 1, 2, 1, 0]], dtype=jnp.int32)

    params = init_params(k_par, D, 4 * D)

    hid_out, ext_out = fetcher_forward(img, hid, seq, params, SOC, EOS)
    jax.block_until_ready((hid_out, ext_out))
    assert hid_out.shape == (B, S, D)
    assert ext_out.shape[0] == B and ext_out.shape[2] == D
    print("KERNEL_OK")
</pallas_src>

<mosaic_0001>
module attributes {stable_mosaic.version = 11 : i64} {
  func.func @_md_kernel(%arg0: i32, %arg1: memref<2x8x32xf32, #tpu.memory_space<vmem>>, %arg2: memref<2x16x32xf32, #tpu.memory_space<vmem>>, %arg3: memref<2x1x8xf32, #tpu.memory_space<vmem>>, %arg4: memref<32x96xbf16, #tpu.memory_space<vmem>>, %arg5: memref<32x32xbf16, #tpu.memory_space<vmem>>, %arg6: memref<32x32xbf16, #tpu.memory_space<vmem>>, %arg7: memref<32x64xbf16, #tpu.memory_space<vmem>>, %arg8: memref<32x32xbf16, #tpu.memory_space<vmem>>, %arg9: memref<32x128xbf16, #tpu.memory_space<vmem>>, %arg10: memref<128x32xbf16, #tpu.memory_space<vmem>>, %arg11: memref<2x8x32xf32, #tpu.memory_space<vmem>>) attributes {dimension_semantics = [#tpu.dimension_semantics<parallel>], iteration_bounds = array<i64: 1>, scalar_prefetch = 0 : i64, scratch_operands = 0 : i64, tpu.core_type = #tpu.core_type<tc>, window_params = [{transform_indices = @transform_0, window_bounds = array<i64: 2, 8, 32>}, {transform_indices = @transform_1, window_bounds = array<i64: 2, 16, 32>}, {transform_indices = @transform_2, window_bounds = array<i64: 2, 1, 8>}, {pipeline_mode = #tpu.pipeline_mode<synchronous>, transform_indices = @transform_3, window_bounds = array<i64: 32, 96>}, {pipeline_mode = #tpu.pipeline_mode<synchronous>, transform_indices = @transform_4, window_bounds = array<i64: 32, 32>}, {pipeline_mode = #tpu.pipeline_mode<synchronous>, transform_indices = @transform_5, window_bounds = array<i64: 32, 32>}, {pipeline_mode = #tpu.pipeline_mode<synchronous>, transform_indices = @transform_6, window_bounds = array<i64: 32, 64>}, {pipeline_mode = #tpu.pipeline_mode<synchronous>, transform_indices = @transform_7, window_bounds = array<i64: 32, 32>}, {pipeline_mode = #tpu.pipeline_mode<synchronous>, transform_indices = @transform_8, window_bounds = array<i64: 32, 128>}, {pipeline_mode = #tpu.pipeline_mode<synchronous>, transform_indices = @transform_9, window_bounds = array<i64: 128, 32>}, {transform_indices = @transform_10, window_bounds = array<i64: 2, 8, 32>}]} {
    %c0 = arith.constant 0 : index
    %c0_0 = arith.constant 0 : index
    %c0_1 = arith.constant 0 : index
    %0 = vector.load %arg1[%c0, %c0_0, %c0_1] : memref<2x8x32xf32, #tpu.memory_space<vmem>>, vector<2x8x32xf32>
    %c0_2 = arith.constant 0 : index
    %c0_3 = arith.constant 0 : index
    %c0_4 = arith.constant 0 : index
    %1 = vector.load %arg2[%c0_2, %c0_3, %c0_4] : memref<2x16x32xf32, #tpu.memory_space<vmem>>, vector<2x16x32xf32>
    %c0_5 = arith.constant 0 : index
    %c0_6 = arith.constant 0 : index
    %c0_7 = arith.constant 0 : index
    %2 = vector.load %arg3[%c0_5, %c0_6, %c0_7] : memref<2x1x8xf32, #tpu.memory_space<vmem>>, vector<2x1x8xf32>
    %cst = arith.constant dense<0.000000e+00> : vector<2x8xf32>
    %3 = vector.multi_reduction <add>, %0, %cst [2] : vector<2x8x32xf32> to vector<2x8xf32>
    %4 = vector.shape_cast %3 : vector<2x8xf32> to vector<2x8x1xf32>
    %cst_8 = arith.constant 3.200000e+01 : f32
    %5 = vector.broadcast %cst_8 : f32 to vector<2x8x1xf32>
    %6 = arith.divf %4, %5 : vector<2x8x1xf32>
    %7 = vector.broadcast %6 : vector<2x8x1xf32> to vector<2x8x32xf32>
    %8 = arith.subf %0, %7 : vector<2x8x32xf32>
    %9 = arith.mulf %8, %8 : vector<2x8x32xf32>
    %cst_9 = arith.constant dense<0.000000e+00> : vector<2x8xf32>
    %10 = vector.multi_reduction <add>, %9, %cst_9 [2] : vector<2x8x32xf32> to vector<2x8xf32>
    %11 = vector.shape_cast %10 : vector<2x8xf32> to vector<2x8x1xf32>
    %cst_10 = arith.constant 3.200000e+01 : f32
    %12 = vector.broadcast %cst_10 : f32 to vector<2x8x1xf32>
    %13 = arith.divf %11, %12 : vector<2x8x1xf32>
    %14 = vector.broadcast %6 : vector<2x8x1xf32> to vector<2x8x32xf32>
    %15 = arith.subf %0, %14 : vector<2x8x32xf32>
    %cst_11 = arith.constant 9.99999974E-6 : f32
    %16 = vector.broadcast %cst_11 : f32 to vector<2x8x1xf32>
    %17 = arith.addf %13, %16 : vector<2x8x1xf32>
    %18 = math.rsqrt %17 : vector<2x8x1xf32>
    %19 = vector.broadcast %18 : vector<2x8x1xf32> to vector<2x8x32xf32>
    %20 = arith.mulf %15, %19 : vector<2x8x32xf32>
    %21 = vector.shape_cast %20 : vector<2x8x32xf32> to vector<16x32xf32>
    %c0_12 = arith.constant 0 : index
    %c0_13 = arith.constant 0 : index
    %22 = vector.load %arg4[%c0_12, %c0_13] : memref<32x96xbf16, #tpu.memory_space<vmem>>, vector<32x96xbf16>
    %23 = arith.truncf %21 : vector<16x32xf32> to vector<16x32xbf16>
    %cst_14 = arith.constant dense<0.000000e+00> : vector<16x96xf32>
    %24 = tpu.matmul %23, %22, %cst_14 {dimension_numbers = #tpu.dot_dimension_numbers<[1], [0], [0], [1], [0, 0, 1, 1], [], []>} : vector<16x32xbf16>, vector<32x96xbf16>, vector<16x96xf32> -> vector<16x96xf32>
    %25 = vector.extract_strided_slice %24 {offsets = [0, 0], sizes = [16, 32], strides = [1, 1]} : vector<16x96xf32> to vector<16x32xf32>
    %26 = vector.shape_cast %25 : vector<16x32xf32> to vector<2x8x32xf32>
    %27 = vector.extract_strided_slice %24 {offsets = [0, 32], sizes = [16, 32], strides = [1, 1]} : vector<16x96xf32> to vector<16x32xf32>
    %28 = vector.shape_cast %27 : vector<16x32xf32> to vector<2x8x32xf32>
    %29 = vector.extract_strided_slice %24 {offsets = [0, 64], sizes = [16, 32], strides = [1, 1]} : vector<16x96xf32> to vector<16x32xf32>
    %30 = vector.shape_cast %29 : vector<16x32xf32> to vector<2x8x32xf32>
    %31 = arith.truncf %26 : vector<2x8x32xf32> to vector<2x8x32xbf16>
    %32 = arith.truncf %28 : vector<2x8x32xf32> to vector<2x8x32xbf16>
    "tpu.trace_start"() <{level = 10 : i32, message = "bqd,bkd->bqk"}> : () -> ()
    %cst_15 = arith.constant dense<0.000000e+00> : vector<2x8x8xf32>
    %33 = tpu.matmul %31, %32, %cst_15 {dimension_numbers = #tpu.dot_dimension_numbers<[2], [2], [1], [1], [0, 0, 0, 1, 1, 1], [0], [0]>} : vector<2x8x32xbf16>, vector<2x8x32xbf16>, vector<2x8x8xf32> -> vector<2x8x8xf32>
    "tpu.trace_stop"() : () -> ()
    %cst_16 = arith.constant 0.176776692 : f32
    %34 = vector.broadcast %cst_16 : f32 to vector<2x8x8xf32>
    %35 = arith.mulf %33, %34 : vector<2x8x8xf32>
    %36 = vector.broadcast %2 : vector<2x1x8xf32> to vector<2x8x8xf32>
    %37 = arith.addf %35, %36 : vector<2x8x8xf32>
    %cst_17 = arith.constant dense<0xFF800000> : vector<2x8xf32>
    %38 = vector.multi_reduction <maximumf>, %37, %cst_17 [2] : vector<2x8x8xf32> to vector<2x8xf32>
    %39 = vector.shape_cast %38 : vector<2x8xf32> to vector<2x8x1xf32>
    %40 = vector.broadcast %39 : vector<2x8x1xf32> to vector<2x8x8xf32>
    %41 = arith.subf %37, %40 : vector<2x8x8xf32>
    %42 = math.exp %41 : vector<2x8x8xf32>
    %cst_18 = arith.constant dense<0.000000e+00> : vector<2x8xf32>
    %43 = vector.multi_reduction <add>, %42, %cst_18 [2] : vector<2x8x8xf32> to vector<2x8xf32>
    %44 = vector.shape_cast %43 : vector<2x8xf32> to vector<2x8x1xf32>
    %45 = tpu.reciprocal %44 {approx = true} : vector<2x8x1xf32> -> vector<2x8x1xf32>
    %46 = vector.broadcast %45 : vector<2x8x1xf32> to vector<2x8x8xf32>
    %47 = arith.mulf %42, %46 : vector<2x8x8xf32>
    %48 = arith.truncf %47 : vector<2x8x8xf32> to vector<2x8x8xbf16>
    %49 = arith.truncf %30 : vector<2x8x32xf32> to vector<2x8x32xbf16>
    "tpu.trace_start"() <{level = 10 : i32, message = "bqk,bkd->bqd"}> : () -> ()
    %cst_19 = arith.constant dense<0.000000e+00> : vector<2x8x32xf32>
    %50 = tpu.matmul %48, %49, %cst_19 {dimension_numbers = #tpu.dot_dimension_numbers<[2], [1], [1], [2], [0, 0, 0, 1, 1, 2], [0], [0]>} : vector<2x8x8xbf16>, vector<2x8x32xbf16>, vector<2x8x32xf32> -> vector<2x8x32xf32>
    "tpu.trace_stop"() : () -> ()
    %51 = vector.shape_cast %50 : vector<2x8x32xf32> to vector<16x32xf32>
    %c0_20 = arith.constant 0 : index
    %c0_21 = arith.constant 0 : index
    %52 = vector.load %arg5[%c0_20, %c0_21] : memref<32x32xbf16, #tpu.memory_space<vmem>>, vector<32x32xbf16>
    %53 = arith.truncf %51 : vector<16x32xf32> to vector<16x32xbf16>
    %cst_22 = arith.constant dense<0.000000e+00> : vector<16x32xf32>
    %54 = tpu.matmul %53, %52, %cst_22 {dimension_numbers = #tpu.dot_dimension_numbers<[1], [0], [0], [1], [0, 0, 1, 1], [], []>} : vector<16x32xbf16>, vector<32x32xbf16>, vector<16x32xf32> -> vector<16x32xf32>
    %55 = vector.shape_cast %54 : vector<16x32xf32> to vector<2x8x32xf32>
    %56 = arith.addf %0, %55 : vector<2x8x32xf32>
    %cst_23 = arith.constant dense<0.000000e+00> : vector<2x8xf32>
    %57 = vector.multi_reduction <add>, %56, %cst_23 [2] : vector<2x8x32xf32> to vector<2x8xf32>
    %58 = vector.shape_cast %57 : vector<2x8xf32> to vector<2x8x1xf32>
    %cst_24 = arith.constant 3.200000e+01 : f32
    %59 = vector.broadcast %cst_24 : f32 to vector<2x8x1xf32>
    %60 = arith.divf %58, %59 : vector<2x8x1xf32>
    %61 = vector.broadcast %60 : vector<2x8x1xf32> to vector<2x8x32xf32>
    %62 = arith.subf %56, %61 : vector<2x8x32xf32>
    %63 = arith.mulf %62, %62 : vector<2x8x32xf32>
    %cst_25 = arith.constant dense<0.000000e+00> : vector<2x8xf32>
    %64 = vector.multi_reduction <add>, %63, %cst_25 [2] : vector<2x8x32xf32> to vector<2x8xf32>
    %65 = vector.shape_cast %64 : vector<2x8xf32> to vector<2x8x1xf32>
    %cst_26 = arith.constant 3.200000e+01 : f32
    %66 = vector.broadcast %cst_26 : f32 to vector<2x8x1xf32>
    %67 = arith.divf %65, %66 : vector<2x8x1xf32>
    %68 = vector.broadcast %60 : vector<2x8x1xf32> to vector<2x8x32xf32>
    %69 = arith.subf %56, %68 : vector<2x8x32xf32>
    %cst_27 = arith.constant 9.99999974E-6 : f32
    %70 = vector.broadcast %cst_27 : f32 to vector<2x8x1xf32>
    %71 = arith.addf %67, %70 : vector<2x8x1xf32>
    %72 = math.rsqrt %71 : vector<2x8x1xf32>
    %73 = vector.broadcast %72 : vector<2x8x1xf32> to vector<2x8x32xf32>
    %74 = arith.mulf %69, %73 : vector<2x8x32xf32>
    %75 = vector.shape_cast %74 : vector<2x8x32xf32> to vector<16x32xf32>
    %c0_28 = arith.constant 0 : index
    %c0_29 = arith.constant 0 : index
    %76 = vector.load %arg6[%c0_28, %c0_29] : memref<32x32xbf16, #tpu.memory_space<vmem>>, vector<32x32xbf16>
    %77 = arith.truncf %75 : vector<16x32xf32> to vector<16x32xbf16>
    %cst_30 = arith.constant dense<0.000000e+00> : vector<16x32xf32>
    %78 = tpu.matmul %77, %76, %cst_30 {dimension_numbers = #tpu.dot_dimension_numbers<[1], [0], [0], [1], [0, 0, 1, 1], [], []>} : vector<16x32xbf16>, vector<32x32xbf16>, vector<16x32xf32> -> vector<16x32xf32>
    %79 = vector.shape_cast %78 : vector<16x32xf32> to vector<2x8x32xf32>
    %80 = vector.shape_cast %1 : vector<2x16x32xf32> to vector<32x32xf32>
    %c0_31 = arith.constant 0 : index
    %c0_32 = arith.constant 0 : index
    %81 = vector.load %arg7[%c0_31, %c0_32] : memref<32x64xbf16, #tpu.memory_space<vmem>>, vector<32x64xbf16>
    %82 = arith.truncf %80 : vector<32x32xf32> to vector<32x32xbf16>
    %cst_33 = arith.constant dense<0.000000e+00> : vector<32x64xf32>
    %83 = tpu.matmul %82, %81, %cst_33 {dimension_numbers = #tpu.dot_dimension_numbers<[1], [0], [0], [1], [0, 0, 1, 1], [], []>} : vector<32x32xbf16>, vector<32x64xbf16>, vector<32x64xf32> -> vector<32x64xf32>
    %84 = vector.extract_strided_slice %83 {offsets = [0, 0], sizes = [32, 32], strides = [1, 1]} : vector<32x64xf32> to vector<32x32xf32>
    %85 = vector.shape_cast %84 : vector<32x32xf32> to vector<2x16x32xf32>
    %86 = vector.extract_strided_slice %83 {offsets = [0, 32], sizes = [32, 32], strides = [1, 1]} : vector<32x64xf32> to vector<32x32xf32>
    %87 = vector.shape_cast %86 : vector<32x32xf32> to vector<2x16x32xf32>
    %88 = arith.truncf %79 : vector<2x8x32xf32> to vector<2x8x32xbf16>
    %89 = arith.truncf %85 : vector<2x16x32xf32> to vector<2x16x32xbf16>
    "tpu.trace_start"() <{level = 10 : i32, message = "bqd,bkd->bqk"}> : () -> ()
    %cst_34 = arith.constant dense<0.000000e+00> : vector<2x8x16xf32>
    %90 = tpu.matmul %88, %89, %cst_34 {dimension_numbers = #tpu.dot_dimension_numbers<[2], [2], [1], [1], [0, 0, 0, 1, 1, 1], [0], [0]>} : vector<2x8x32xbf16>, vector<2x16x32xbf16>, vector<2x8x16xf32> -> vector<2x8x16xf32>
    "tpu.trace_stop"() : () -> ()
    %cst_35 = arith.constant 0.176776692 : f32
    %91 = vector.broadcast %cst_35 : f32 to vector<2x8x16xf32>
    %92 = arith.mulf %90, %91 : vector<2x8x16xf32>
    %cst_36 = arith.constant dense<0xFF800000> : vector<2x8xf32>
    %93 = vector.multi_reduction <maximumf>, %92, %cst_36 [2] : vector<2x8x16xf32> to vector<2x8xf32>
    %94 = vector.shape_cast %93 : vector<2x8xf32> to vector<2x8x1xf32>
    %95 = vector.broadcast %94 : vector<2x8x1xf32> to vector<2x8x16xf32>
    %96 = arith.subf %92, %95 : vector<2x8x16xf32>
    %97 = math.exp %96 : vector<2x8x16xf32>
    %cst_37 = arith.constant dense<0.000000e+00> : vector<2x8xf32>
    %98 = vector.multi_reduction <add>, %97, %cst_37 [2] : vector<2x8x16xf32> to vector<2x8xf32>
    %99 = vector.shape_cast %98 : vector<2x8xf32> to vector<2x8x1xf32>
    %100 = tpu.reciprocal %99 {approx = true} : vector<2x8x1xf32> -> vector<2x8x1xf32>
    %101 = vector.broadcast %100 : vector<2x8x1xf32> to vector<2x8x16xf32>
    %102 = arith.mulf %97, %101 : vector<2x8x16xf32>
    %103 = arith.truncf %102 : vector<2x8x16xf32> to vector<2x8x16xbf16>
    %104 = arith.truncf %87 : vector<2x16x32xf32> to vector<2x16x32xbf16>
    "tpu.trace_start"() <{level = 10 : i32, message = "bqk,bkd->bqd"}> : () -> ()
    %cst_38 = arith.constant dense<0.000000e+00> : vector<2x8x32xf32>
    %105 = tpu.matmul %103, %104, %cst_38 {dimension_numbers = #tpu.dot_dimension_numbers<[2], [1], [1], [2], [0, 0, 0, 1, 1, 2], [0], [0]>} : vector<2x8x16xbf16>, vector<2x16x32xbf16>, vector<2x8x32xf32> -> vector<2x8x32xf32>
    "tpu.trace_stop"() : () -> ()
    %106 = vector.shape_cast %105 : vector<2x8x32xf32> to vector<16x32xf32>
    %c0_39 = arith.constant 0 : index
    %c0_40 = arith.constant 0 : index
    %107 = vector.load %arg8[%c0_39, %c0_40] : memref<32x32xbf16, #tpu.memory_space<vmem>>, vector<32x32xbf16>
    %108 = arith.truncf %106 : vector<16x32xf32> to vector<16x32xbf16>
    %cst_41 = arith.constant dense<0.000000e+00> : vector<16x32xf32>
    %109 = tpu.matmul %108, %107, %cst_41 {dimension_numbers = #tpu.dot_dimension_numbers<[1], [0], [0], [1], [0, 0, 1, 1], [], []>} : vector<16x32xbf16>, vector<32x32xbf16>, vector<16x32xf32> -> vector<16x32xf32>
    %110 = vector.shape_cast %109 : vector<16x32xf32> to vector<2x8x32xf32>
    %111 = arith.addf %56, %110 : vector<2x8x32xf32>
    %cst_42 = arith.constant dense<0.000000e+00> : vector<2x8xf32>
    %112 = vector.multi_reduction <add>, %111, %cst_42 [2] : vector<2x8x32xf32> to vector<2x8xf32>
    %113 = vector.shape_cast %112 : vector<2x8xf32> to vector<2x8x1xf32>
    %cst_43 = arith.constant 3.200000e+01 : f32
    %114 = vector.broadcast %cst_43 : f32 to vector<2x8x1xf32>
    %115 = arith.divf %113, %114 : vector<2x8x1xf32>
    %116 = vector.broadcast %115 : vector<2x8x1xf32> to vector<2x8x32xf32>
    %117 = arith.subf %111, %116 : vector<2x8x32xf32>
    %118 = arith.mulf %117, %117 : vector<2x8x32xf32>
    %cst_44 = arith.constant dense<0.000000e+00> : vector<2x8xf32>
    %119 = vector.multi_reduction <add>, %118, %cst_44 [2] : vector<2x8x32xf32> to vector<2x8xf32>
    %120 = vector.shape_cast %119 : vector<2x8xf32> to vector<2x8x1xf32>
    %cst_45 = arith.constant 3.200000e+01 : f32
    %121 = vector.broadcast %cst_45 : f32 to vector<2x8x1xf32>
    %122 = arith.divf %120, %121 : vector<2x8x1xf32>
    %123 = vector.broadcast %115 : vector<2x8x1xf32> to vector<2x8x32xf32>
    %124 = arith.subf %111, %123 : vector<2x8x32xf32>
    %cst_46 = arith.constant 9.99999974E-6 : f32
    %125 = vector.broadcast %cst_46 : f32 to vector<2x8x1xf32>
    %126 = arith.addf %122, %125 : vector<2x8x1xf32>
    %127 = math.rsqrt %126 : vector<2x8x1xf32>
    %128 = vector.broadcast %127 : vector<2x8x1xf32> to vector<2x8x32xf32>
    %129 = arith.mulf %124, %128 : vector<2x8x32xf32>
    %130 = vector.shape_cast %129 : vector<2x8x32xf32> to vector<16x32xf32>
    %c0_47 = arith.constant 0 : index
    %c0_48 = arith.constant 0 : index
    %131 = vector.load %arg9[%c0_47, %c0_48] : memref<32x128xbf16, #tpu.memory_space<vmem>>, vector<32x128xbf16>
    %132 = arith.truncf %130 : vector<16x32xf32> to vector<16x32xbf16>
    %cst_49 = arith.constant dense<0.000000e+00> : vector<16x128xf32>
    %133 = tpu.matmul %132, %131, %cst_49 {dimension_numbers = #tpu.dot_dimension_numbers<[1], [0], [0], [1], [0, 0, 1, 1], [], []>} : vector<16x32xbf16>, vector<32x128xbf16>, vector<16x128xf32> -> vector<16x128xf32>
    %cst_50 = arith.constant 0.000000e+00 : f32
    %134 = vector.broadcast %cst_50 : f32 to vector<16x128xf32>
    %135 = arith.maximumf %133, %134 : vector<16x128xf32>
    %c0_51 = arith.constant 0 : index
    %c0_52 = arith.constant 0 : index
    %136 = vector.load %arg10[%c0_51, %c0_52] : memref<128x32xbf16, #tpu.memory_space<vmem>>, vector<128x32xbf16>
    %137 = arith.truncf %135 : vector<16x128xf32> to vector<16x128xbf16>
    %cst_53 = arith.constant dense<0.000000e+00> : vector<16x32xf32>
    %138 = tpu.matmul %137, %136, %cst_53 {dimension_numbers = #tpu.dot_dimension_numbers<[1], [0], [0], [1], [0, 0, 1, 1], [], []>} : vector<16x128xbf16>, vector<128x32xbf16>, vector<16x32xf32> -> vector<16x32xf32>
    %139 = vector.shape_cast %138 : vector<16x32xf32> to vector<2x8x32xf32>
    %140 = arith.addf %111, %139 : vector<2x8x32xf32>
    %c0_54 = arith.constant 0 : index
    %c0_55 = arith.constant 0 : index
    %c0_56 = arith.constant 0 : index
    %141 = vector.load %arg11[%c0_54, %c0_55, %c0_56] : memref<2x8x32xf32, #tpu.memory_space<vmem>>, vector<2x8x32xf32>
    tpu.vector_store %arg11[%c0_54, %c0_55, %c0_56], %140 {strides = array<i32>} : memref<2x8x32xf32, #tpu.memory_space<vmem>>, vector<2x8x32xf32>,
    return
  }
  func.func @transform_0(%arg0: i32) -> (i32, i32, i32) {
    %c0_i32 = arith.constant 0 : i32
    %c0_i32_0 = arith.constant 0 : i32
    %c0_i32_1 = arith.constant 0 : i32
    return %arg0, %c0_i32, %c0_i32_0 : i32, i32, i32
  }
  func.func @transform_1(%arg0: i32) -> (i32, i32, i32) {
    %c0_i32 = arith.constant 0 : i32
    %c0_i32_0 = arith.constant 0 : i32
    %c0_i32_1 = arith.constant 0 : i32
    return %arg0, %c0_i32, %c0_i32_0 : i32, i32, i32
  }
  func.func @transform_2(%arg0: i32) -> (i32, i32, i32) {
    %c0_i32 = arith.constant 0 : i32
    %c0_i32_0 = arith.constant 0 : i32
    %c0_i32_1 = arith.constant 0 : i32
    return %arg0, %c0_i32, %c0_i32_0 : i32, i32, i32
  }
  func.func @transform_3(%arg0: i32) -> (i32, i32) {
    %c0_i32 = arith.constant 0 : i32
    %c0_i32_0 = arith.constant 0 : i32
    %c0_i32_1 = arith.constant 0 : i32
    return %c0_i32, %c0_i32_0 : i32, i32
  }
  func.func @transform_4(%arg0: i32) -> (i32, i32) {
    %c0_i32 = arith.constant 0 : i32
    %c0_i32_0 = arith.constant 0 : i32
    %c0_i32_1 = arith.constant 0 : i32
    return %c0_i32, %c0_i32_0 : i32, i32
  }
  func.func @transform_5(%arg0: i32) -> (i32, i32) {
    %c0_i32 = arith.constant 0 : i32
    %c0_i32_0 = arith.constant 0 : i32
    %c0_i32_1 = arith.constant 0 : i32
    return %c0_i32, %c0_i32_0 : i32, i32
  }
  func.func @transform_6(%arg0: i32) -> (i32, i32) {
    %c0_i32 = arith.constant 0 : i32
    %c0_i32_0 = arith.constant 0 : i32
    %c0_i32_1 = arith.constant 0 : i32
    return %c0_i32, %c0_i32_0 : i32, i32
  }
  func.func @transform_7(%arg0: i32) -> (i32, i32) {
    %c0_i32 = arith.constant 0 : i32
    %c0_i32_0 = arith.constant 0 : i32
    %c0_i32_1 = arith.constant 0 : i32
    return %c0_i32, %c0_i32_0 : i32, i32
  }
  func.func @transform_8(%arg0: i32) -> (i32, i32) {
    %c0_i32 = arith.constant 0 : i32
    %c0_i32_0 = arith.constant 0 : i32
    %c0_i32_1 = arith.constant 0 : i32
    return %c0_i32, %c0_i32_0 : i32, i32
  }
  func.func @transform_9(%arg0: i32) -> (i32, i32) {
    %c0_i32 = arith.constant 0 : i32
    %c0_i32_0 = arith.constant 0 : i32
    %c0_i32_1 = arith.constant 0 : i32
    return %c0_i32, %c0_i32_0 : i32, i32
  }
  func.func @transform_10(%arg0: i32) -> (i32, i32, i32) {
    %c0_i32 = arith.constant 0 : i32
    %c0_i32_0 = arith.constant 0 : i32
    %c0_i32_1 = arith.constant 0 : i32
    return %arg0, %c0_i32, %c0_i32_0 : i32, i32, i32
  }
}

</mosaic_0001>

<llo_original>
// kernel: tpu_custom_call.1
$region0: #{tpu_custom_call.1}
  #allocation0 [shape = 'u32[]', space=smem, size = 0x4, offset = 0x4, fixed_abs, tag = 'smem constant byte address 0x4 - core index']
  #allocation1 [shape = 'u32[72,128]{1,0:T(1,128)}', space=vmem, size = 0x9000, scoped, tag = 'internal scratch']
  %s0 = inlined_call_operand.vmem [shape: f32[2,8,32], index: 0, kind: input, shape index: {}]
  %s1 = inlined_call_operand.vmem [shape: f32[2,16,32], index: 1, kind: input, shape index: {}]
  %s2 = inlined_call_operand.hbm [shape: f32[2,1,8], index: 2, kind: input, shape index: {}]
  %s3 = inlined_call_operand.vmem [shape: bf16[32,96], index: 3, kind: input, shape index: {}]
  %s4 = inlined_call_operand.vmem [shape: bf16[32,32], index: 4, kind: input, shape index: {}]
  %s5 = inlined_call_operand.hbm [shape: bf16[32,32], index: 5, kind: input, shape index: {}]
  %s6 = inlined_call_operand.hbm [shape: bf16[32,64], index: 6, kind: input, shape index: {}]
  %s7 = inlined_call_operand.hbm [shape: bf16[32,32], index: 7, kind: input, shape index: {}]
  %s8 = inlined_call_operand.hbm [shape: bf16[32,128], index: 8, kind: input, shape index: {}]
  %s9 = inlined_call_operand.vmem [shape: bf16[128,32], index: 9, kind: input, shape index: {}]
  %s10 = inlined_call_operand.hbm [shape: f32[2,8,32], index: 10, kind: output, shape index: {}]
  %s11 = sld [smem:[#allocation0]]
  $region70: #{tpu_custom_call.1} parent=0
    _
  %s13 = ssub.s32 1, %s11
  %s14 = scalar_select 0, %s13, %s11
  $region1: #{tpu_custom_call.1} parent=0
    #allocation2 [shape = 'u8[1024]{0}', space=vmem, size = 0x400, scoped, tag = 'input window, operand 2, single buffered']
    #allocation3 [shape = 's32[1]{0}', space=sflag, size = 0x4, scoped, tag = 'scoped memory for tpu_custom_call.1']
    #allocation4 [shape = 's32[1]{0}', space=sflag, size = 0x4, scoped, tag = 'scoped memory for tpu_custom_call.1']
    #allocation5 [shape = 'u8[8192]{0}', space=vmem, size = 0x2000, scoped, tag = 'input window, operand 5, single buffered']
    #allocation6 [shape = 's32[1]{0}', space=sflag, size = 0x4, scoped, tag = 'scoped memory for tpu_custom_call.1']
    #allocation7 [shape = 'u8[8192]{0}', space=vmem, size = 0x2000, scoped, tag = 'input window, operand 6, single buffered']
    #allocation8 [shape = 'u8[8192]{0}', space=vmem, size = 0x2000, scoped, tag = 'input window, operand 7, single buffered']
    #allocation9 [shape = 's32[1]{0}', space=sflag, size = 0x4, scoped, tag = 'scoped memory for tpu_custom_call.1']
    #allocation10 [shape = 'u8[8192]{0}', space=vmem, size = 0x2000, scoped, tag = 'input window, operand 8, single buffered']
    #allocation11 [shape = 'u8[8192]{0}', space=vmem, size = 0x2000, scoped, tag = 'output window, operand 0, single buffered']
    %15 = vsyncpa [#allocation3], 0
    %16 = vsyncpa [#allocation6], 0
    %17 = vsyncpa [#allocation9], 0
    %18 = vsyncpa [#allocation4], 0
    // Predicated region
    $region2: #{tpu_custom_call.1} parent=1 // pred_check
      _
    $region3: #{tpu_custom_call.1} parent=1 // pred_check_branch
      %20 = sbr.rel (0) target = $region5
    $region4: #{tpu_custom_call.1} parent=1 // pred_region
      _
    $region5: #{tpu_custom_call.1} parent=1 // pred_fallthru
      _
    // Predicated region
    $region6: #{tpu_custom_call.1} parent=1 // pred_check
      _
    $region7: #{tpu_custom_call.1} parent=1 // pred_check_branch
      %22 = sbr.rel (0) target = $region9
    $region8: #{tpu_custom_call.1} parent=1 // pred_region
      _
    $region9: #{tpu_custom_call.1} parent=1 // pred_fallthru
      _
    // Predicated region
    $region10: #{tpu_custom_call.1} parent=1 // pred_check
      _
    $region11: #{tpu_custom_call.1} parent=1 // pred_check_branch
      %24 = sbr.rel (0) target = $region13
    $region12: #{tpu_custom_call.1} parent=1 // pred_region
      %26 = vsyncadd [#allocation3], 0
      %s27 = sshll.u32 %s2, 4
      %s28 = int_to_ptr.hbm [resolvable:$true] %s27
      %s29 = sshll.u32 [#allocation2], 4
      %s30 = int_to_ptr.vmem [resolvable:$true] %s29
      %35 = dma.hbm_to_vmem [thread:$0]  %s28, 32, %s30, [#allocation3], 16, 16, 1
    $region13: #{tpu_custom_call.1} parent=1 // pred_fallthru
      _
    // Predicated region
    $region14: #{tpu_custom_call.1} parent=1 // pred_check
      _
    $region15: #{tpu_custom_call.1} parent=1 // pred_check_branch
      %37 = sbr.rel (0) target = $region17
    $region16: #{tpu_custom_call.1} parent=1 // pred_region
      _
    $region17: #{tpu_custom_call.1} parent=1 // pred_fallthru
      _
    // Predicated region
    $region18: #{tpu_custom_call.1} parent=1 // pred_check
      _
    $region19: #{tpu_custom_call.1} parent=1 // pred_check_branch
      %39 = sbr.rel (0) target = $region21
    $region20: #{tpu_custom_call.1} parent=1 // pred_region
      _
    $region21: #{tpu_custom_call.1} parent=1 // pred_fallthru
      _
    // Predicated region
    $region22: #{tpu_custom_call.1} parent=1 // pred_check
      _
    $region23: #{tpu_custom_call.1} parent=1 // pred_check_branch
      %41 = sbr.rel (0) target = $region25
    $region24: #{tpu_custom_call.1} parent=1 // pred_region
      %43 = vsyncadd [#allocation6], 0
      %s44 = sshll.u32 %s5, 4
      %s45 = int_to_ptr.hbm [resolvable:$true] %s44
      %s46 = sshll.u32 [#allocation5], 4
      %s47 = int_to_ptr.vmem [resolvable:$true] %s46
      %52 = dma.hbm_to_vmem [thread:$0]  %s45, 256, %s47, [#allocation6], 64, 64, 4
    $region25: #{tpu_custom_call.1} parent=1 // pred_fallthru
      _
    // Predicated region
    $region26: #{tpu_custom_call.1} parent=1 // pred_check
      _
    $region27: #{tpu_custom_call.1} parent=1 // pred_check_branch
      %54 = sbr.rel (0) target = $region29
    $region28: #{tpu_custom_call.1} parent=1 // pred_region
      %56 = vsyncadd [#allocation6], 0
      %s57 = sshll.u32 %s6, 4
      %s58 = int_to_ptr.hbm [resolvable:$true] %s57
      %s59 = sshll.u32 [#allocation7], 4
      %s60 = int_to_ptr.vmem [resolvable:$true] %s59
      %65 = dma.hbm_to_vmem [thread:$0]  %s58, 256, %s60, [#allocation6], 64, 64, 4
    $region29: #{tpu_custom_call.1} parent=1 // pred_fallthru
      _
    // Predicated region
    $region30: #{tpu_custom_call.1} parent=1 // pred_check
      _
    $region31: #{tpu_custom_call.1} parent=1 // pred_check_branch
      %67 = sbr.rel (0) target = $region33
    $region32: #{tpu_custom_call.1} parent=1 // pred_region
      %69 = vsyncadd [#allocation9], 0
      %s70 = sshll.u32 %s7, 4
      %s71 = int_to_ptr.hbm [resolvable:$true] %s70
      %s72 = sshll.u32 [#allocation8], 4
      %s73 = int_to_ptr.vmem [resolvable:$true] %s72
      %78 = dma.hbm_to_vmem [thread:$0]  %s71, 256, %s73, [#allocation9], 64, 64, 4
    $region33: #{tpu_custom_call.1} parent=1 // pred_fallthru
      _
    // Predicated region
    $region34: #{tpu_custom_call.1} parent=1 // pred_check
      _
    $region35: #{tpu_custom_call.1} parent=1 // pred_check_branch
      %80 = sbr.rel (0) target = $region37
    $region36: #{tpu_custom_call.1} parent=1 // pred_region
      %82 = vsyncadd [#allocation9], 0
      %s83 = sshll.u32 %s8, 4
      %s84 = int_to_ptr.hbm [resolvable:$true] %s83
      %s85 = sshll.u32 [#allocation10], 4
      %s86 = int_to_ptr.vmem [resolvable:$true] %s85
      %91 = dma.hbm_to_vmem [thread:$0]  %s84, 256, %s86, [#allocation9], 64, 64, 4
    $region37: #{tpu_custom_call.1} parent=1 // pred_fallthru
      _
    // Predicated region
    $region38: #{tpu_custom_call.1} parent=1 // pred_check
      _
    $region39: #{tpu_custom_call.1} parent=1 // pred_check_branch
      %93 = sbr.rel (0) target = $region41
    $region40: #{tpu_custom_call.1} parent=1 // pred_region
      _
    $region41: #{tpu_custom_call.1} parent=1 // pred_fallthru
      _
    // Predicated region
    $region42: #{tpu_custom_call.1} parent=1 // pred_check
      _
    $region43: #{tpu_custom_call.1} parent=1 // pred_check_branch
      %95 = sbr.rel (0) target = $region45
    $region44: #{tpu_custom_call.1} parent=1 // pred_region
      %97 = dma.done [#allocation3], 32
    $region45: #{tpu_custom_call.1} parent=1 // pred_fallthru
      _
    // Predicated region
    $region46: #{tpu_custom_call.1} parent=1 // pred_check
      _
    $region47: #{tpu_custom_call.1} parent=1 // pred_check_branch
      %99 = sbr.rel (0) target = $region49
    $region48: #{tpu_custom_call.1} parent=1 // pred_region
      %101 = dma.done [#allocation6], 256
    $region49: #{tpu_custom_call.1} parent=1 // pred_fallthru
      _
    // Predicated region
    $region50: #{tpu_custom_call.1} parent=1 // pred_check
      _
    $region51: #{tpu_custom_call.1} parent=1 // pred_check_branch
      %103 = sbr.rel (0) target = $region53
    $region52: #{tpu_custom_call.1} parent=1 // pred_region
      %105 = dma.done [#allocation6], 256
    $region53: #{tpu_custom_call.1} parent=1 // pred_fallthru
      _
    // Predicated region
    $region54: #{tpu_custom_call.1} parent=1 // pred_check
      _
    $region55: #{tpu_custom_call.1} parent=1 // pred_check_branch
      %107 = sbr.rel (0) target = $region57
    $region56: #{tpu_custom_call.1} parent=1 // pred_region
      %109 = dma.done [#allocation9], 256
    $region57: #{tpu_custom_call.1} parent=1 // pred_fallthru
      _
    // Predicated region
    $region58: #{tpu_custom_call.1} parent=1 // pred_check
      _
    $region59: #{tpu_custom_call.1} parent=1 // pred_check_branch
      %111 = sbr.rel (0) target = $region61
    $region60: #{tpu_custom_call.1} parent=1 // pred_region
      %113 = dma.done [#allocation9], 256
    $region61: #{tpu_custom_call.1} parent=1 // pred_fallthru
      _
    %v115 = vld [vmem:[%s0] sm:$0xff]
    %v116 = vld [vmem:[%s0 + $0x8] sm:$0xff]
    %v117 = vld [vmem:[%s1] sm:$0xff]
    %v118 = vld [vmem:[%s1 + $0x8] sm:$0xff]
    %v119 = vld [vmem:[%s1 + $0x10] sm:$0xff]
    %v120 = vld [vmem:[%s1 + $0x18] sm:$0xff]
    %v121 = vld [vmem:[#allocation2] sm:$0x1]
    %v122 = vld [vmem:[#allocation2 + $0x1] sm:$0x1]
    %vm123 = vcmask 261120
    %v124 = vsel %vm123, %v115, 0.0
    %125 = vadd.xlane.f32.xlu0 %v124
    %v126 = vpop.xlane.xlu0 %125
    %v127 = vsel %vm123, %v116, 0.0
    %128 = vadd.xlane.f32.xlu0 %v127
    %v129 = vpop.xlane.xlu0 %128
    %v130 = vrcp.pop 32.0
    %v131 = vmul.f32 32.0, %v130
    %v132 = vsub.f32 1.0, %v131
    %v133 = vmul.f32 %v130, %v132
    %v134 = vadd.f32 %v130, %v133
    %vm135 = vweird.f32 %v130
    %v136 = vsel %vm135, %v130, %v134
    %v137 = vmul.f32 %v126, %v136
    %v138 = vmul.f32 %v129, %v136
    %v139 = vsub.f32 %v115, %v137
    %v140 = vsub.f32 %v116, %v138
    %v141 = vmul.f32 %v139, %v139
    %v142 = vmul.f32 %v140, %v140
    %v143 = vsel %vm123, %v141, 0.0
    %144 = vadd.xlane.f32.xlu0 %v143
    %v145 = vpop.xlane.xlu0 %144
    %v146 = vsel %vm123, %v142, 0.0
    %147 = vadd.xlane.f32.xlu0 %v146
    %v148 = vpop.xlane.xlu0 %147
    %v149 = vmul.f32 %v145, %v136
    %v150 = vmul.f32 %v148, %v136
    %v151 = vadd.f32 %v149, 1e-05
    %v152 = vadd.f32 %v150, 1e-05
    %v153 = vrsqrt.pop %v151
    %v154 = vmul.f32 %v153, %v151
    %v155 = vmul.f32 %v154, %v153
    %v156 = vmul.f32 0.5, %v155
    %v157 = vsub.f32 1.5, %v156
    %v158 = vmul.f32 %v153, %v157
    %vm159 = vweird.f32 %v151
    %vm160 = vweird.f32 %v153
    %vm161 = vmor %vm159, %vm160
    %v162 = vsel %vm161, %v153, %v158
    %v163 = vrsqrt.pop %v152
    %v164 = vmul.f32 %v163, %v152
    %v165 = vmul.f32 %v164, %v163
    %v166 = vmul.f32 0.5, %v165
    %v167 = vsub.f32 1.5, %v166
    %v168 = vmul.f32 %v163, %v167
    %vm169 = vweird.f32 %v152
    %vm170 = vweird.f32 %v163
    %vm171 = vmor %vm169, %vm170
    %v172 = vsel %vm171, %v163, %v168
    %v173 = vmul.f32 %v139, %v162
    %v174 = vmul.f32 %v140, %v172
    %v175 = vld [vmem:[%s3] sm:$0xf]
    %v176 = vld [vmem:[%s3 + $0x4] sm:$0xf]
    %v177 = vld [vmem:[%s3 + $0x8] sm:$0xf]
    %v178 = vld [vmem:[%s3 + $0xc] sm:$0xf]
    %v179 = vpack.c.bf16 %v174, %v173
    %v184 = vunpack.c.l.b16 %v175
    %v185 = vunpack.c.l.b16 %v176
    %v186 = vunpack.c.l.b16 %v177
    %v187 = vunpack.c.l.b16 %v178
    %v188 = vpack.c.b16 %v185, %v184
    %v189 = vpack.c.b16 %v187, %v186
    %v193 = vsel %vm123, %v179, 0
    %195 = vmatpush.bf16.msra.mxu0 0
    %196 = vmatpush.bf16.msra.mxu0 0
    %197 = vmatpush.bf16.msra.mxu0 0
    %198 = vmatpush.bf16.msra.mxu0 0
    %199 = vmatpush.bf16.msra.mxu0 0
    %200 = vmatpush.bf16.msra.mxu0 0
    %201 = vmatpush.bf16.msra.mxu0 %v189
    %202 = vmatpush.bf16.msra.mxu0 %v188
    %203 = vmatmul.bf16.gmra.mxu0 %v193
    %v204 = vpop.f32.mrf.mxu0
    %v205 = vadd.f32 0.0, %v204
    %v206 = vpop.f32.mrf.mxu0
    %v207 = vadd.f32 0.0, %v206
    %208 = vdwg.mxu0
    %v209 = vpack.c.bf16 %v205, %v205
    %v210 = vpack.c.bf16 %v207, %v207
    %v212 = vunpack.c.l.b16 %v209
    %v213 = vpack.c.b16 %v212, %v212
    %214 = vrot.lane.b32.xlu0 %v213, 96
    %v215 = vpop.permute.xlu0 %214
    %v217 = vsel %vm123, %v209, 0
    %v220 = vsel %vm123, %v215, 0
    %222 = vmatpush.bf16.xpose.msra.mxu0 0
    %223 = vmatpush.bf16.xpose.msra.mxu0 0
    %224 = vmatpush.bf16.xpose.msra.mxu0 0
    %225 = vmatpush.bf16.xpose.msra.mxu0 0
    %226 = vmatpush.bf16.xpose.msra.mxu0 0
    %227 = vmatpush.bf16.xpose.msra.mxu0 0
    %228 = vmatpush.bf16.xpose.msra.mxu0 0
    %229 = vmatpush.bf16.xpose.msra.mxu0 %v220
    %230 = vmatmul.bf16.gmra.mxu0 %v217
    %v231 = vpop.f32.mrf.mxu0
    %v232 = vadd.f32 0.0, %v231
    %v233 = vpop.f32.mrf.mxu0
    %234 = vdwg.mxu0
    %v236 = vunpack.c.l.b16 %v210
    %v237 = vpack.c.b16 %v236, %v236
    %238 = vrot.lane.b32.xlu0 %v237, 96
    %v239 = vpop.permute.xlu0 %238
    %v241 = vsel %vm123, %v210, 0
    %v244 = vsel %vm123, %v239, 0
    %246 = vmatpush.bf16.xpose.msra.mxu0 0
    %247 = vmatpush.bf16.xpose.msra.mxu0 0
    %248 = vmatpush.bf16.xpose.msra.mxu0 0
    %249 = vmatpush.bf16.xpose.msra.mxu0 0
    %250 = vmatpush.bf16.xpose.msra.mxu0 0
    %251 = vmatpush.bf16.xpose.msra.mxu0 0
    %252 = vmatpush.bf16.xpose.msra.mxu0 0
    %253 = vmatpush.bf16.xpose.msra.mxu0 %v244
    %254 = vmatmul.bf16.gmra.mxu0 %v241
    %v255 = vpop.f32.mrf.mxu0
    %v256 = vadd.f32 0.0, %v255
    %v257 = vpop.f32.mrf.mxu0
    %258 = vdwg.mxu0
    %v259 = vmul.f32 %v232, 0.17677669
    %v260 = vmul.f32 %v256, 0.17677669
    %v263 = vperm.slane %v121, 0
    %v264 = vperm.slane %v122, 0
    %v267 = vadd.f32 %v259, %v263
    %v268 = vadd.f32 %v260, %v264
    %vm269 = vcmask 64512
    %v270 = vsel %vm269, %v267, -inf
    %271 = vmax.xlane.f32.xlu0 %v270
    %v272 = vpop.xlane.xlu0 %271
    %v273 = vsel %vm269, %v268, -inf
    %274 = vmax.xlane.f32.xlu0 %v273
    %v275 = vpop.xlane.xlu0 %274
    %v276 = vsub.f32 %v267, %v272
    %v277 = vsub.f32 %v268, %v275
    %v278 = vmul.f32 %v276, 1.442695
    %v279 = vpow.pop %v278
    %v280 = vmul.f32 %v277, 1.442695
    %v281 = vpow.pop %v280
    %v282 = vsel %vm269, %v279, 0.0
    %283 = vadd.xlane.f32.xlu0 %v282
    %v284 = vpop.xlane.xlu0 %283
    %v285 = vsel %vm269, %v281, 0.0
    %286 = vadd.xlane.f32.xlu0 %v285
    %v287 = vpop.xlane.xlu0 %286
    %v288 = vrcp.pop %v284
    %v289 = vrcp.pop %v287
    %v290 = vmul.f32 %v279, %v288
    %v291 = vmul.f32 %v281, %v289
    %v292 = vpack.c.bf16 %v290, %v290
    %v293 = vpack.c.bf16 %v291, %v291
    %294 = vrot.lane.b32.xlu0 %v213, 64
    %v295 = vpop.permute.xlu0 %294
    %v297 = vsel %vm269, %v292, 0
    %vm299 = vcmask 1043456
    %v301 = vsel %vm299, %v295, 0
    %303 = vmatpush.bf16.msra.mxu0 0
    %304 = vmatpush.bf16.msra.mxu0 0
    %305 = vmatpush.bf16.msra.mxu0 0
    %306 = vmatpush.bf16.msra.mxu0 0
    %307 = vmatpush.bf16.msra.mxu0 0
    %308 = vmatpush.bf16.msra.mxu0 0
    %309 = vmatpush.bf16.msra.mxu0 0
    %310 = vmatpush.bf16.msra.mxu0 %v301
    %311 = vmatmul.bf16.gmra.mxu0 %v297
    %v312 = vpop.f32.mrf.mxu0
    %v313 = vadd.f32 0.0, %v312
    %v314 = vpop.f32.mrf.mxu0
    %315 = vdwg.mxu0
    %316 = vrot.lane.b32.xlu0 %v237, 64
    %v317 = vpop.permute.xlu0 %316
    %v319 = vsel %vm269, %v293, 0
    %v322 = vsel %vm299, %v317, 0
    %324 = vmatpush.bf16.msra.mxu0 0
    %325 = vmatpush.bf16.msra.mxu0 0
    %326 = vmatpush.bf16.msra.mxu0 0
    %327 = vmatpush.bf16.msra.mxu0 0
    %328 = vmatpush.bf16.msra.mxu0 0
    %329 = vmatpush.bf16.msra.mxu0 0
    %330 = vmatpush.bf16.msra.mxu0 0
    %331 = vmatpush.bf16.msra.mxu0 %v322
    %332 = vmatmul.bf16.gmra.mxu0 %v319
    %v333 = vpop.f32.mrf.mxu0
    %v334 = vadd.f32 0.0, %v333
    %v335 = vpop.f32.mrf.mxu0
    %336 = vdwg.mxu0
    %v337 = vld [vmem:[%s4] sm:$0xf]
    %v338 = vld [vmem:[%s4 + $0x4] sm:$0xf]
    %v339 = vld [vmem:[%s4 + $0x8] sm:$0xf]
    %v340 = vld [vmem:[%s4 + $0xc] sm:$0xf]
    %v341 = vpack.c.bf16 %v334, %v313
    %v346 = vunpack.c.l.b16 %v337
    %v347 = vunpack.c.l.b16 %v338
    %v348 = vunpack.c.l.b16 %v339
    %v349 = vunpack.c.l.b16 %v340
    %v350 = vpack.c.b16 %v347, %v346
    %v351 = vpack.c.b16 %v349, %v348
    %v355 = vsel %vm123, %v341, 0
    %357 = vmatpush.bf16.msra.mxu0 0
    %358 = vmatpush.bf16.msra.mxu0 0
    %359 = vmatpush.bf16.msra.mxu0 0
    %360 = vmatpush.bf16.msra.mxu0 0
    %361 = vmatpush.bf16.msra.mxu0 0
    %362 = vmatpush.bf16.msra.mxu0 0
    %363 = vmatpush.bf16.msra.mxu0 %v351
    %364 = vmatpush.bf16.msra.mxu0 %v350
    %365 = vmatmul.bf16.gmra.mxu0 %v355
    %v366 = vpop.f32.mrf.mxu0
    %v367 = vadd.f32 0.0, %v366
    %v368 = vpop.f32.mrf.mxu0
    %v369 = vadd.f32 0.0, %v368
    %370 = vdwg.mxu0
    %v371 = vadd.f32 %v115, %v367
    %v372 = vadd.f32 %v116, %v369
    %v373 = vsel %vm123, %v371, 0.0
    %374 = vadd.xlane.f32.xlu0 %v373
    %v375 = vpop.xlane.xlu0 %374
    %v376 = vsel %vm123, %v372, 0.0
    %377 = vadd.xlane.f32.xlu0 %v376
    %v378 = vpop.xlane.xlu0 %377
    %v379 = vmul.f32 %v375, %v136
    %v380 = vmul.f32 %v378, %v136
    %v381 = vsub.f32 %v371, %v379
    %v382 = vsub.f32 %v372, %v380
    %v383 = vmul.f32 %v381, %v381
    %v384 = vmul.f32 %v382, %v382
    %v385 = vsel %vm123, %v383, 0.0
    %386 = vadd.xlane.f32.xlu0 %v385
    %v387 = vpop.xlane.xlu0 %386
    %v388 = vsel %vm123, %v384, 0.0
    %389 = vadd.xlane.f32.xlu0 %v388
    %v390 = vpop.xlane.xlu0 %389
    %v391 = vmul.f32 %v387, %v136
    %v392 = vmul.f32 %v390, %v136
    %v393 = vadd.f32 %v391, 1e-05
    %v394 = vadd.f32 %v392, 1e-05
    %v395 = vrsqrt.pop %v393
    %v396 = vmul.f32 %v395, %v393
    %v397 = vmul.f32 %v396, %v395
    %v398 = vmul.f32 0.5, %v397
    %v399 = vsub.f32 1.5, %v398
    %v400 = vmul.f32 %v395, %v399
    %vm401 = vweird.f32 %v393
    %vm402 = vweird.f32 %v395
    %vm403 = vmor %vm401, %vm402
    %v404 = vsel %vm403, %v395, %v400
    %v405 = vrsqrt.pop %v394
    %v406 = vmul.f32 %v405, %v394
    %v407 = vmul.f32 %v406, %v405
    %v408 = vmul.f32 0.5, %v407
    %v409 = vsub.f32 1.5, %v408
    %v410 = vmul.f32 %v405, %v409
    %vm411 = vweird.f32 %v394
    %vm412 = vweird.f32 %v405
    %vm413 = vmor %vm411, %vm412
    %v414 = vsel %vm413, %v405, %v410
    %v415 = vmul.f32 %v381, %v404
    %v416 = vmul.f32 %v382, %v414
    %v417 = vld [vmem:[#allocation5] sm:$0xf]
    %v418 = vld [vmem:[#allocation5 + $0x4] sm:$0xf]
    %v419 = vld [vmem:[#allocation5 + $0x8] sm:$0xf]
    %v420 = vld [vmem:[#allocation5 + $0xc] sm:$0xf]
    %v421 = vpack.c.bf16 %v416, %v415
    %v426 = vunpack.c.l.b16 %v417
    %v427 = vunpack.c.l.b16 %v418
    %v428 = vunpack.c.l.b16 %v419
    %v429 = vunpack.c.l.b16 %v420
    %v430 = vpack.c.b16 %v427, %v426
    %v431 = vpack.c.b16 %v429, %v428
    %v435 = vsel %vm123, %v421, 0
    %437 = vmatpush.bf16.msra.mxu0 0
    %438 = vmatpush.bf16.msra.mxu0 0
    %439 = vmatpush.bf16.msra.mxu0 0
    %440 = vmatpush.bf16.msra.mxu0 0
    %441 = vmatpush.bf16.msra.mxu0 0
    %442 = vmatpush.bf16.msra.mxu0 0
    %443 = vmatpush.bf16.msra.mxu0 %v431
    %444 = vmatpush.bf16.msra.mxu0 %v430
    %445 = vmatmul.bf16.gmra.mxu0 %v435
    %v446 = vpop.f32.mrf.mxu0
    %v447 = vadd.f32 0.0, %v446
    %v448 = vpop.f32.mrf.mxu0
    %v449 = vadd.f32 0.0, %v448
    %450 = vdwg.mxu0
    %v451 = vld [vmem:[#allocation7] sm:$0xf]
    %v452 = vld [vmem:[#allocation7 + $0x4] sm:$0xf]
    %v453 = vld [vmem:[#allocation7 + $0x8] sm:$0xf]
    %v454 = vld [vmem:[#allocation7 + $0xc] sm:$0xf]
    %v455 = vpack.c.bf16 %v118, %v117
    %v456 = vpack.c.bf16 %v120, %v119
    %v461 = vunpack.c.l.b16 %v451
    %v462 = vunpack.c.l.b16 %v452
    %v463 = vunpack.c.l.b16 %v453
    %v464 = vunpack.c.l.b16 %v454
    %v465 = vpack.c.b16 %v462, %v461
    %v466 = vpack.c.b16 %v464, %v463
    %v470 = vsel %vm123, %v455, 0
    %v473 = vsel %vm123, %v456, 0
    %475 = vmatpush.bf16.msra.mxu0 0
    %476 = vmatpush.bf16.msra.mxu0 0
    %477 = vmatpush.bf16.msra.mxu0 0
    %478 = vmatpush.bf16.msra.mxu0 0
    %479 = vmatpush.bf16.msra.mxu0 0
    %480 = vmatpush.bf16.msra.mxu0 0
    %481 = vmatpush.bf16.msra.mxu0 %v466
    %482 = vmatpush.bf16.msra.mxu0 %v465
    %483 = vmatmul.bf16.gmra.mxu0 %v470
    %v484 = vpop.f32.mrf.mxu0
    %v485 = vadd.f32 0.0, %v484
    %v486 = vpop.f32.mrf.mxu0
    %v487 = vadd.f32 0.0, %v486
    %488 = vmatmul.bf16.gmra.mxu0 %v473
    %v489 = vpop.f32.mrf.mxu0
    %v490 = vadd.f32 0.0, %v489
    %v491 = vpop.f32.mrf.mxu0
    %v492 = vadd.f32 0.0, %v491
    %493 = vdwg.mxu0
    %v494 = vpack.c.bf16 %v447, %v447
    %v495 = vpack.c.bf16 %v449, %v449
    %v496 = vpack.c.bf16 %v485, %v485
    %v497 = vpack.c.bf16 %v487, %v487
    %v498 = vpack.c.bf16 %v490, %v490
    %v499 = vpack.c.bf16 %v492, %v492
    %v502 = vunpack.c.l.b16 %v496
    %v503 = vunpack.c.l.b16 %v497
    %v504 = vpack.c.b16 %v503, %v502
    %v506 = vsel %vm123, %v494, 0
    %v509 = vsel %vm123, %v504, 0
    %511 = vmatpush.bf16.xpose.msra.mxu0 0
    %512 = vmatpush.bf16.xpose.msra.mxu0 0
    %513 = vmatpush.bf16.xpose.msra.mxu0 0
    %514 = vmatpush.bf16.xpose.msra.mxu0 0
    %515 = vmatpush.bf16.xpose.msra.mxu0 0
    %516 = vmatpush.bf16.xpose.msra.mxu0 0
    %517 = vmatpush.bf16.xpose.msra.mxu0 0
    %518 = vmatpush.bf16.xpose.msra.mxu0 %v509
    %519 = vmatmul.bf16.gmra.mxu0 %v506
    %v520 = vpop.f32.mrf.mxu0
    %v521 = vadd.f32 0.0, %v520
    %v522 = vpop.f32.mrf.mxu0
    %523 = vdwg.mxu0
    %v526 = vunpack.c.l.b16 %v498
    %v527 = vunpack.c.l.b16 %v499
    %v528 = vpack.c.b16 %v527, %v526
    %v530 = vsel %vm123, %v495, 0
    %v533 = vsel %vm123, %v528, 0
    %535 = vmatpush.bf16.xpose.msra.mxu0 0
    %536 = vmatpush.bf16.xpose.msra.mxu0 0
    %537 = vmatpush.bf16.xpose.msra.mxu0 0
    %538 = vmatpush.bf16.xpose.msra.mxu0 0
    %539 = vmatpush.bf16.xpose.msra.mxu0 0
    %540 = vmatpush.bf16.xpose.msra.mxu0 0
    %541 = vmatpush.bf16.xpose.msra.mxu0 0
    %542 = vmatpush.bf16.xpose.msra.mxu0 %v533
    %543 = vmatmul.bf16.gmra.mxu0 %v530
    %v544 = vpop.f32.mrf.mxu0
    %v545 = vadd.f32 0.0, %v544
    %v546 = vpop.f32.mrf.mxu0
    %547 = vdwg.mxu0
    %v548 = vmul.f32 %v521, 0.17677669
    %v549 = vmul.f32 %v545, 0.17677669
    %vm550 = vcmask 130048
    %v551 = vsel %vm550, %v548, -inf
    %552 = vmax.xlane.f32.xlu0 %v551
    %v553 = vpop.xlane.xlu0 %552
    %v554 = vsel %vm550, %v549, -inf
    %555 = vmax.xlane.f32.xlu0 %v554
    %v556 = vpop.xlane.xlu0 %555
    %v557 = vsub.f32 %v548, %v553
    %v558 = vsub.f32 %v549, %v556
    %v559 = vmul.f32 %v557, 1.442695
    %v560 = vpow.pop %v559
    %v561 = vmul.f32 %v558, 1.442695
    %v562 = vpow.pop %v561
    %v563 = vsel %vm550, %v560, 0.0
    %564 = vadd.xlane.f32.xlu0 %v563
    %v565 = vpop.xlane.xlu0 %564
    %v566 = vsel %vm550, %v562, 0.0
    %567 = vadd.xlane.f32.xlu0 %v566
    %v568 = vpop.xlane.xlu0 %567
    %v569 = vrcp.pop %v565
    %v570 = vrcp.pop %v568
    %v571 = vmul.f32 %v560, %v569
    %v572 = vmul.f32 %v562, %v570
    %v573 = vpack.c.bf16 %v571, %v571
    %v574 = vpack.c.bf16 %v572, %v572
    %575 = vrot.lane.b32.xlu0 %v504, 96
    %v576 = vpop.permute.xlu0 %575
    %v579 = vsel %vm550, %v573, 0
    %581 = vmatpush.bf16.msra.mxu0 0
    %582 = vmatpush.bf16.msra.mxu0 0
    %583 = vmatpush.bf16.msra.mxu0 0
    %584 = vmatpush.bf16.msra.mxu0 0
    %585 = vmatpush.bf16.msra.mxu0 0
    %586 = vmatpush.bf16.msra.mxu0 0
    %587 = vmatpush.bf16.msra.mxu0 0
    %588 = vmatpush.bf16.msra.mxu0 %v576
    %589 = vmatmul.bf16.gmra.mxu0 %v579
    %v590 = vpop.f32.mrf.mxu0
    %v591 = vadd.f32 0.0, %v590
    %v592 = vpop.f32.mrf.mxu0
    %593 = vdwg.mxu0
    %594 = vrot.lane.b32.xlu0 %v528, 96
    %v595 = vpop.permute.xlu0 %594
    %v598 = vsel %vm550, %v574, 0
    %600 = vmatpush.bf16.msra.mxu0 0
    %601 = vmatpush.bf16.msra.mxu0 0
    %602 = vmatpush.bf16.msra.mxu0 0
    %603 = vmatpush.bf16.msra.mxu0 0
    %604 = vmatpush.bf16.msra.mxu0 0
    %605 = vmatpush.bf16.msra.mxu0 0
    %606 = vmatpush.bf16.msra.mxu0 0
    %607 = vmatpush.bf16.msra.mxu0 %v595
    %608 = vmatmul.bf16.gmra.mxu0 %v598
    %v609 = vpop.f32.mrf.mxu0
    %v610 = vadd.f32 0.0, %v609
    %v611 = vpop.f32.mrf.mxu0
    %612 = vdwg.mxu0
    %v613 = vld [vmem:[#allocation8] sm:$0xf]
    %v614 = vld [vmem:[#allocation8 + $0x4] sm:$0xf]
    %v615 = vld [vmem:[#allocation8 + $0x8] sm:$0xf]
    %v616 = vld [vmem:[#allocation8 + $0xc] sm:$0xf]
    %v617 = vpack.c.bf16 %v610, %v591
    %v622 = vunpack.c.l.b16 %v613
    %v623 = vunpack.c.l.b16 %v614
    %v624 = vunpack.c.l.b16 %v615
    %v625 = vunpack.c.l.b16 %v616
    %v626 = vpack.c.b16 %v623, %v622
    %v627 = vpack.c.b16 %v625, %v624
    %v631 = vsel %vm123, %v617, 0
    %633 = vmatpush.bf16.msra.mxu0 0
    %634 = vmatpush.bf16.msra.mxu0 0
    %635 = vmatpush.bf16.msra.mxu0 0
    %636 = vmatpush.bf16.msra.mxu0 0
    %637 = vmatpush.bf16.msra.mxu0 0
    %638 = vmatpush.bf16.msra.mxu0 0
    %639 = vmatpush.bf16.msra.mxu0 %v627
    %640 = vmatpush.bf16.msra.mxu0 %v626
    %641 = vmatmul.bf16.gmra.mxu0 %v631
    %v642 = vpop.f32.mrf.mxu0
    %v643 = vadd.f32 0.0, %v642
    %v644 = vpop.f32.mrf.mxu0
    %v645 = vadd.f32 0.0, %v644
    %646 = vdwg.mxu0
    %v647 = vadd.f32 %v371, %v643
    %v648 = vadd.f32 %v372, %v645
    %v649 = vsel %vm123, %v647, 0.0
    %650 = vadd.xlane.f32.xlu0 %v649
    %v651 = vpop.xlane.xlu0 %650
    %v652 = vsel %vm123, %v648, 0.0
    %653 = vadd.xlane.f32.xlu0 %v652
    %v654 = vpop.xlane.xlu0 %653
    %v655 = vmul.f32 %v651, %v136
    %v656 = vmul.f32 %v654, %v136
    %v657 = vsub.f32 %v647, %v655
    %v658 = vsub.f32 %v648, %v656
    %v659 = vmul.f32 %v657, %v657
    %v660 = vmul.f32 %v658, %v658
    %v661 = vsel %vm123, %v659, 0.0
    %662 = vadd.xlane.f32.xlu0 %v661
    %v663 = vpop.xlane.xlu0 %662
    %v664 = vsel %vm123, %v660, 0.0
    %665 = vadd.xlane.f32.xlu0 %v664
    %v666 = vpop.xlane.xlu0 %665
    %v667 = vmul.f32 %v663, %v136
    %v668 = vmul.f32 %v666, %v136
    %v669 = vadd.f32 %v667, 1e-05
    %v670 = vadd.f32 %v668, 1e-05
    %v671 = vrsqrt.pop %v669
    %v672 = vmul.f32 %v671, %v669
    %v673 = vmul.f32 %v672, %v671
    %v674 = vmul.f32 0.5, %v673
    %v675 = vsub.f32 1.5, %v674
    %v676 = vmul.f32 %v671, %v675
    %vm677 = vweird.f32 %v669
    %vm678 = vweird.f32 %v671
    %vm679 = vmor %vm677, %vm678
    %v680 = vsel %vm679, %v671, %v676
    %v681 = vrsqrt.pop %v670
    %v682 = vmul.f32 %v681, %v670
    %v683 = vmul.f32 %v682, %v681
    %v684 = vmul.f32 0.5, %v683
    %v685 = vsub.f32 1.5, %v684
    %v686 = vmul.f32 %v681, %v685
    %vm687 = vweird.f32 %v670
    %vm688 = vweird.f32 %v681
    %vm689 = vmor %vm687, %vm688
    %v690 = vsel %vm689, %v681, %v686
    %v691 = vmul.f32 %v657, %v680
    %v692 = vmul.f32 %v658, %v690
    %v693 = vld [vmem:[#allocation10] sm:$0xf]
    %v694 = vld [vmem:[#allocation10 + $0x4] sm:$0xf]
    %v695 = vld [vmem:[#allocation10 + $0x8] sm:$0xf]
    %v696 = vld [vmem:[#allocation10 + $0xc] sm:$0xf]
    %v697 = vpack.c.bf16 %v692, %v691
    %v702 = vunpack.c.l.b16 %v693
    %v703 = vunpack.c.l.b16 %v694
    %v704 = vunpack.c.l.b16 %v695
    %v705 = vunpack.c.l.b16 %v696
    %v706 = vpack.c.b16 %v703, %v702
    %v707 = vpack.c.b16 %v705, %v704
    %v711 = vsel %vm123, %v697, 0
    %713 = vmatpush.bf16.msra.mxu0 0
    %714 = vmatpush.bf16.msra.mxu0 0
    %715 = vmatpush.bf16.msra.mxu0 0
    %716 = vmatpush.bf16.msra.mxu0 0
    %717 = vmatpush.bf16.msra.mxu0 0
    %718 = vmatpush.bf16.msra.mxu0 0
    %719 = vmatpush.bf16.msra.mxu0 %v707
    %720 = vmatpush.bf16.msra.mxu0 %v706
    %721 = vmatmul.bf16.gmra.mxu0 %v711
    %v722 = vpop.f32.mrf.mxu0
    %v723 = vadd.f32 0.0, %v722
    %v724 = vpop.f32.mrf.mxu0
    %v725 = vadd.f32 0.0, %v724
    %726 = vdwg.mxu0
    %v727 = vmax.f32 %v723, 0.0
    %v728 = vmax.f32 %v725, 0.0
    %v729 = vld [vmem:[%s9] sm:$0xf]
    %v730 = vld [vmem:[%s9 + $0x4] sm:$0xf]
    %v731 = vld [vmem:[%s9 + $0x8] sm:$0xf]
    %v732 = vld [vmem:[%s9 + $0xc] sm:$0xf]
    %v733 = vld [vmem:[%s9 + $0x10] sm:$0xf]
    %v734 = vld [vmem:[%s9 + $0x14] sm:$0xf]
    %v735 = vld [vmem:[%s9 + $0x18] sm:$0xf]
    %v736 = vld [vmem:[%s9 + $0x1c] sm:$0xf]
    %v737 = vld [vmem:[%s9 + $0x20] sm:$0xf]
    %v738 = vld [vmem:[%s9 + $0x24] sm:$0xf]
    %v739 = vld [vmem:[%s9 + $0x28] sm:$0xf]
    %v740 = vld [vmem:[%s9 + $0x2c] sm:$0xf]
    %v741 = vld [vmem:[%s9 + $0x30] sm:$0xf]
    %v742 = vld [vmem:[%s9 + $0x34] sm:$0xf]
    %v743 = vld [vmem:[%s9 + $0x38] sm:$0xf]
    %v744 = vld [vmem:[%s9 + $0x3c] sm:$0xf]
    %v745 = vpack.c.bf16 %v728, %v727
    %v762 = vunpack.c.l.b16 %v729
    %v763 = vunpack.c.l.b16 %v730
    %v764 = vunpack.c.l.b16 %v731
    %v765 = vunpack.c.l.b16 %v732
    %v766 = vunpack.c.l.b16 %v733
    %v767 = vunpack.c.l.b16 %v734
    %v768 = vunpack.c.l.b16 %v735
    %v769 = vunpack.c.l.b16 %v736
    %v770 = vunpack.c.l.b16 %v737
    %v771 = vunpack.c.l.b16 %v738
    %v772 = vunpack.c.l.b16 %v739
    %v773 = vunpack.c.l.b16 %v740
    %v774 = vunpack.c.l.b16 %v741
    %v775 = vunpack.c.l.b16 %v742
    %v776 = vunpack.c.l.b16 %v743
    %v777 = vunpack.c.l.b16 %v744
    %v778 = vpack.c.b16 %v763, %v762
    %v779 = vpack.c.b16 %v765, %v764
    %v780 = vpack.c.b16 %v767, %v766
    %v781 = vpack.c.b16 %v769, %v768
    %v782 = vpack.c.b16 %v771, %v770
    %v783 = vpack.c.b16 %v773, %v772
    %v784 = vpack.c.b16 %v775, %v774
    %v785 = vpack.c.b16 %v777, %v776
    %794 = vmatpush.bf16.msra.mxu0 %v785
    %795 = vmatpush.bf16.msra.mxu0 %v784
    %796 = vmatpush.bf16.msra.mxu0 %v783
    %797 = vmatpush.bf16.msra.mxu0 %v782
    %798 = vmatpush.bf16.msra.mxu0 %v781
    %799 = vmatpush.bf16.msra.mxu0 %v780
    %800 = vmatpush.bf16.msra.mxu0 %v779
    %801 = vmatpush.bf16.msra.mxu0 %v778
    %802 = vmatmul.bf16.gmra.mxu0 %v745
    %v803 = vpop.f32.mrf.mxu0
    %v804 = vadd.f32 0.0, %v803
    %v805 = vpop.f32.mrf.mxu0
    %v806 = vadd.f32 0.0, %v805
    %807 = vdwg.mxu0
    %v808 = vadd.f32 %v647, %v804
    %v809 = vadd.f32 %v648, %v806
    %810 = vst.msk [vmem:[#allocation11] sm:$0xff] %vm123, %v808
    %811 = vst.msk [vmem:[#allocation11 + $0x8] sm:$0xff] %vm123, %v809
    // Predicated region
    $region62: #{tpu_custom_call.1} parent=1 // pred_check
      _
    $region63: #{tpu_custom_call.1} parent=1 // pred_check_branch
      %813 = sbr.rel (0) target = $region65
    $region64: #{tpu_custom_call.1} parent=1 // pred_region
      %815 = vsyncadd [#allocation4], 0
      %s816 = sshll.u32 [#allocation11], 4
      %s817 = int_to_ptr.vmem [resolvable:$true] %s816
      %s818 = sshll.u32 %s10, 4
      %s819 = int_to_ptr.hbm [resolvable:$true] %s818
      %824 = dma.vmem_to_hbm [thread:$0]  %s817, 256, %s819, [#allocation4], 128, 128, 8
    $region65: #{tpu_custom_call.1} parent=1 // pred_fallthru
      _
    // Predicated region
    $region66: #{tpu_custom_call.1} parent=1 // pred_check
      _
    $region67: #{tpu_custom_call.1} parent=1 // pred_check_branch
      %826 = sbr.rel (0) target = $region69
    $region68: #{tpu_custom_call.1} parent=1 // pred_region
      %828 = dma.done [#allocation4], 256
    $region69: #{tpu_custom_call.1} parent=1 // pred_fallthru
      _
    %829 = vsyncpa [#allocation3], 1
    %830 = vsyncpa [#allocation6], 1
    %831 = vsyncpa [#allocation9], 1
    %832 = vsyncpa [#allocation4], 1

</llo_original>
